<compile_context>
chip_gen: v5e
topology: v5e:2x2
jax: 0.10.0
libtpu: 0.0.40
codegen_flags: <defaults>
</compile_context>

<pallas_src>
import functools

import jax
import jax.numpy as jnp
from jax.experimental import pallas as pl
from jax.experimental.pallas import tpu as pltpu

LANE = 128     # pad feature dims (lane axis) to multiples of this
TILE_M = 128   # batch rows processed per grid step


def _round_up(n, m):
    return ((n + m - 1) // m) * m


def mlp_kernel(x_ref, w1_ref, b1_ref, w2_ref, b2_ref, w3_ref, b3_ref, o_ref):
    # hidden1: Linear + ReLU   (bf16 operands -> MXU, f32 accumulate)
    h1 = jnp.dot(x_ref[...], w1_ref[...], preferred_element_type=jnp.float32)
    h1 = jnp.maximum(h1 + b1_ref[...], 0.0)

    # hidden2: Linear + Sigmoid
    h2 = jnp.dot(h1.astype(w2_ref.dtype), w2_ref[...],
                 preferred_element_type=jnp.float32)
    h2 = jax.nn.sigmoid(h2 + b2_ref[...])

    # predict: Linear
    out = jnp.dot(h2.astype(w3_ref.dtype), w3_ref[...],
                  preferred_element_type=jnp.float32)
    o_ref[...] = (out + b3_ref[...]).astype(o_ref.dtype)


def prepare_params(w1, b1, w2, b2, w3, b3, compute_dtype=jnp.bfloat16):
    """One-time parameter prep: transpose PyTorch (out,in) weights to [in,out],
    zero-pad feature dims to 128-lane multiples, cast weights to bf16, and make
    biases (1, N) f32 tiles."""
    n_input, n_hidden = w1.shape[1], w1.shape[0]
    n_hidden2, n_output = w2.shape[0], w3.shape[0]
    h1p = _round_up(n_hidden, LANE)
    h2p = _round_up(n_hidden2, LANE)
    op = _round_up(n_output, LANE)

    def pad2(a, rows, cols):
        return jnp.pad(a, ((0, rows - a.shape[0]), (0, cols - a.shape[1])))

    w1t = pad2(w1.T, n_input, h1p).astype(compute_dtype)   # [n_input, h1p]
    w2t = pad2(w2.T, h1p, h2p).astype(compute_dtype)       # [h1p,     h2p]
    w3t = pad2(w3.T, h2p, op).astype(compute_dtype)        # [h2p,     op ]
    b1p = jnp.pad(b1, (0, h1p - n_hidden)).reshape(1, h1p).astype(jnp.float32)
    b2p = jnp.pad(b2, (0, h2p - n_hidden2)).reshape(1, h2p).astype(jnp.float32)
    b3p = jnp.pad(b3, (0, op - n_output)).reshape(1, op).astype(jnp.float32)
    return (w1t, b1p, w2t, b2p, w3t, b3p), n_output


@functools.partial(jax.jit, static_argnames=("n_output",))
def net_forward(x, params, n_output):
    w1t, b1, w2t, b2, w3t, b3 = params
    batch, n_input = x.shape
    op = w3t.shape[1]

    # Pad batch to a multiple of TILE_M (padded rows are garbage, sliced off below).
    bp = _round_up(batch, TILE_M)
    xp = jnp.pad(x, ((0, bp - batch), (0, 0))).astype(w1t.dtype)

    full = lambda a: pl.BlockSpec(a.shape, lambda i: (0,) * a.ndim)  # VMEM-resident

    out = pl.pallas_call(
        mlp_kernel,
        out_shape=jax.ShapeDtypeStruct((bp, op), jnp.float32),
        grid_spec=pltpu.PrefetchScalarGridSpec(
            num_scalar_prefetch=0,
            grid=(bp // TILE_M,),
            in_specs=[
                pl.BlockSpec((TILE_M, n_input), lambda i: (i, 0)),  # x: blocked on batch
                full(w1t), full(b1),
                full(w2t), full(b2),
                full(w3t), full(b3),
            ],
            out_specs=pl.BlockSpec((TILE_M, op), lambda i: (i, 0)),
        ),
        compiler_params=pltpu.CompilerParams(
            dimension_semantics=("parallel",)),  # shards batch tiles across v7x's 2 TCs
    )(xp, w1t, b1, w2t, b2, w3t, b3)

    return out[:batch, :n_output]


def init_linear(key, in_features, out_features):
    # PyTorch nn.Linear default init: U(-k, k) with k = 1/sqrt(in_features).
    kw, kb = jax.random.split(key)
    bound = 1.0 / (in_features ** 0.5)
    w = jax.random.uniform(kw, (out_features, in_features), jnp.float32,
                           minval=-bound, maxval=bound)
    b = jax.random.uniform(kb, (out_features,), jnp.float32,
                           minval=-bound, maxval=bound)
    return w, b


if __name__ == "__main__":
    # Net(n_input=32, n_hidden=64, n_hidden2=32, n_output=16)
    n_input, n_hidden, n_hidden2, n_output = 32, 64, 32, 16
    batch = 200  # not a multiple of 128: exercises batch padding; grid=(2,)

    key = jax.random.PRNGKey(0)
    kx, k1, k2, k3 = jax.random.split(key, 4)

    x = jax.random.normal(kx, (batch, n_input), jnp.float32)
    w1, b1 = init_linear(k1, n_input, n_hidden)
    w2, b2 = init_linear(k2, n_hidden, n_hidden2)
    w3, b3 = init_linear(k3, n_hidden2, n_output)

    params, n_out = prepare_params(w1, b1, w2, b2, w3, b3)
    out = net_forward(x, params, n_out)
    jax.block_until_ready(out)

    # Pure-JAX f32 reference of the original PyTorch module.
    ref = jnp.maximum(x @ w1.T + b1, 0.0)
    ref = jax.nn.sigmoid(ref @ w2.T + b2)
    ref = ref @ w3.T + b3

    assert out.shape == (batch, n_output), f"bad output shape {out.shape}"
    # bf16 MXU operands loosen the tolerance vs the f32 reference (per review).
    assert jnp.allclose(out, ref, atol=3e-2, rtol=3e-2), "mismatch vs reference"

    print("KERNEL_OK")
</pallas_src>

<mosaic_0001>
module attributes {stable_mosaic.version = 11 : i64} {
  func.func @mlp_kernel(%arg0: i32, %arg1: memref<128x32xbf16, #tpu.memory_space<vmem>>, %arg2: memref<32x128xbf16, #tpu.memory_space<vmem>>, %arg3: memref<1x128xf32, #tpu.memory_space<vmem>>, %arg4: memref<128x128xbf16, #tpu.memory_space<vmem>>, %arg5: memref<1x128xf32, #tpu.memory_space<vmem>>, %arg6: memref<128x128xbf16, #tpu.memory_space<vmem>>, %arg7: memref<1x128xf32, #tpu.memory_space<vmem>>, %arg8: memref<128x128xf32, #tpu.memory_space<vmem>>) attributes {dimension_semantics = [#tpu.dimension_semantics<parallel>], iteration_bounds = array<i64: 2>, scalar_prefetch = 0 : i64, scratch_operands = 0 : i64, tpu.core_type = #tpu.core_type<tc>, window_params = [{transform_indices = @transform_0, window_bounds = array<i64: 128, 32>}, {pipeline_mode = #tpu.pipeline_mode<synchronous>, transform_indices = @transform_1, window_bounds = array<i64: 32, 128>}, {pipeline_mode = #tpu.pipeline_mode<synchronous>, transform_indices = @transform_2, window_bounds = array<i64: 1, 128>}, {pipeline_mode = #tpu.pipeline_mode<synchronous>, transform_indices = @transform_3, window_bounds = array<i64: 128, 128>}, {pipeline_mode = #tpu.pipeline_mode<synchronous>, transform_indices = @transform_4, window_bounds = array<i64: 1, 128>}, {pipeline_mode = #tpu.pipeline_mode<synchronous>, transform_indices = @transform_5, window_bounds = array<i64: 128, 128>}, {pipeline_mode = #tpu.pipeline_mode<synchronous>, transform_indices = @transform_6, window_bounds = array<i64: 1, 128>}, {transform_indices = @transform_7, window_bounds = array<i64: 128, 128>}]} {
    %c0 = arith.constant 0 : index
    %c0_0 = arith.constant 0 : index
    %0 = vector.load %arg1[%c0, %c0_0] : memref<128x32xbf16, #tpu.memory_space<vmem>>, vector<128x32xbf16>
    %c0_1 = arith.constant 0 : index
    %c0_2 = arith.constant 0 : index
    %1 = vector.load %arg2[%c0_1, %c0_2] : memref<32x128xbf16, #tpu.memory_space<vmem>>, vector<32x128xbf16>
    %cst = arith.constant dense<0.000000e+00> : vector<128x128xf32>
    %2 = tpu.matmul %0, %1, %cst {dimension_numbers = #tpu.dot_dimension_numbers<[1], [0], [0], [1], [0, 0, 1, 1], [], []>} : vector<128x32xbf16>, vector<32x128xbf16>, vector<128x128xf32> -> vector<128x128xf32>
    %c0_3 = arith.constant 0 : index
    %c0_4 = arith.constant 0 : index
    %3 = vector.load %arg3[%c0_3, %c0_4] : memref<1x128xf32, #tpu.memory_space<vmem>>, vector<1x128xf32>
    %4 = vector.broadcast %3 : vector<1x128xf32> to vector<128x128xf32>
    %5 = arith.addf %2, %4 : vector<128x128xf32>
    %cst_5 = arith.constant 0.000000e+00 : f32
    %6 = vector.broadcast %cst_5 : f32 to vector<128x128xf32>
    %7 = arith.maximumf %5, %6 : vector<128x128xf32>
    %8 = arith.truncf %7 : vector<128x128xf32> to vector<128x128xbf16>
    %c0_6 = arith.constant 0 : index
    %c0_7 = arith.constant 0 : index
    %9 = vector.load %arg4[%c0_6, %c0_7] : memref<128x128xbf16, #tpu.memory_space<vmem>>, vector<128x128xbf16>
    %cst_8 = arith.constant dense<0.000000e+00> : vector<128x128xf32>
    %10 = tpu.matmul %8, %9, %cst_8 {dimension_numbers = #tpu.dot_dimension_numbers<[1], [0], [0], [1], [0, 0, 1, 1], [], []>} : vector<128x128xbf16>, vector<128x128xbf16>, vector<128x128xf32> -> vector<128x128xf32>
    %c0_9 = arith.constant 0 : index
    %c0_10 = arith.constant 0 : index
    %11 = vector.load %arg5[%c0_9, %c0_10] : memref<1x128xf32, #tpu.memory_space<vmem>>, vector<1x128xf32>
    %12 = vector.broadcast %11 : vector<1x128xf32> to vector<128x128xf32>
    %13 = arith.addf %10, %12 : vector<128x128xf32>
    %14 = arith.negf %13 : vector<128x128xf32>
    %15 = math.exp %14 : vector<128x128xf32>
    %cst_11 = arith.constant 1.000000e+00 : f32
    %16 = vector.broadcast %cst_11 : f32 to vector<128x128xf32>
    %17 = arith.addf %16, %15 : vector<128x128xf32>
    %18 = arith.divf %16, %17 : vector<128x128xf32>
    %19 = arith.truncf %18 : vector<128x128xf32> to vector<128x128xbf16>
    %c0_12 = arith.constant 0 : index
    %c0_13 = arith.constant 0 : index
    %20 = vector.load %arg6[%c0_12, %c0_13] : memref<128x128xbf16, #tpu.memory_space<vmem>>, vector<128x128xbf16>
    %cst_14 = arith.constant dense<0.000000e+00> : vector<128x128xf32>
    %21 = tpu.matmul %19, %20, %cst_14 {dimension_numbers = #tpu.dot_dimension_numbers<[1], [0], [0], [1], [0, 0, 1, 1], [], []>} : vector<128x128xbf16>, vector<128x128xbf16>, vector<128x128xf32> -> vector<128x128xf32>
    %c0_15 = arith.constant 0 : index
    %c0_16 = arith.constant 0 : index
    %22 = vector.load %arg7[%c0_15, %c0_16] : memref<1x128xf32, #tpu.memory_space<vmem>>, vector<1x128xf32>
    %23 = vector.broadcast %22 : vector<1x128xf32> to vector<128x128xf32>
    %24 = arith.addf %21, %23 : vector<128x128xf32>
    %c0_17 = arith.constant 0 : index
    %c0_18 = arith.constant 0 : index
    %25 = vector.load %arg8[%c0_17, %c0_18] : memref<128x128xf32, #tpu.memory_space<vmem>>, vector<128x128xf32>
    tpu.vector_store %arg8[%c0_17, %c0_18], %24 {strides = array<i32>} : memref<128x128xf32, #tpu.memory_space<vmem>>, vector<128x128xf32>,
    return
  }
  func.func @transform_0(%arg0: i32) -> (i32, i32) {
    %c0_i32 = arith.constant 0 : i32
    %c0_i32_0 = arith.constant 0 : i32
    return %arg0, %c0_i32 : i32, i32
  }
  func.func @transform_1(%arg0: i32) -> (i32, i32) {
    %c0_i32 = arith.constant 0 : i32
    %c0_i32_0 = arith.constant 0 : i32
    %c0_i32_1 = arith.constant 0 : i32
    return %c0_i32, %c0_i32_0 : i32, i32
  }
  func.func @transform_2(%arg0: i32) -> (i32, i32) {
    %c0_i32 = arith.constant 0 : i32
    %c0_i32_0 = arith.constant 0 : i32
    %c0_i32_1 = arith.constant 0 : i32
    return %c0_i32, %c0_i32_0 : i32, i32
  }
  func.func @transform_3(%arg0: i32) -> (i32, i32) {
    %c0_i32 = arith.constant 0 : i32
    %c0_i32_0 = arith.constant 0 : i32
    %c0_i32_1 = arith.constant 0 : i32
    return %c0_i32, %c0_i32_0 : i32, i32
  }
  func.func @transform_4(%arg0: i32) -> (i32, i32) {
    %c0_i32 = arith.constant 0 : i32
    %c0_i32_0 = arith.constant 0 : i32
    %c0_i32_1 = arith.constant 0 : i32
    return %c0_i32, %c0_i32_0 : i32, i32
  }
  func.func @transform_5(%arg0: i32) -> (i32, i32) {
    %c0_i32 = arith.constant 0 : i32
    %c0_i32_0 = arith.constant 0 : i32
    %c0_i32_1 = arith.constant 0 : i32
    return %c0_i32, %c0_i32_0 : i32, i32
  }
  func.func @transform_6(%arg0: i32) -> (i32, i32) {
    %c0_i32 = arith.constant 0 : i32
    %c0_i32_0 = arith.constant 0 : i32
    %c0_i32_1 = arith.constant 0 : i32
    return %c0_i32, %c0_i32_0 : i32, i32
  }
  func.func @transform_7(%arg0: i32) -> (i32, i32) {
    %c0_i32 = arith.constant 0 : i32
    %c0_i32_0 = arith.constant 0 : i32
    return %arg0, %c0_i32 : i32, i32
  }
}

</mosaic_0001>

<llo_original>
// kernel: net_forward.1
$region0: #{net_forward.1}
  #allocation0 [shape = 'u32[]', space=smem, size = 0x4, offset = 0x4, fixed_abs, tag = 'smem constant byte address 0x4 - core index']
  #allocation1 [shape = 'u32[72,128]{1,0:T(1,128)}', space=vmem, size = 0x9000, scoped, tag = 'internal scratch']
  %s0 = inlined_call_operand.vmem [shape: bf16[256,32], index: 0, kind: input, shape index: {}]
  %s1 = inlined_call_operand.vmem [shape: bf16[32,128], index: 1, kind: input, shape index: {}]
  %s2 = inlined_call_operand.vmem [shape: f32[1,128], index: 2, kind: input, shape index: {}]
  %s3 = inlined_call_operand.vmem [shape: bf16[128,128], index: 3, kind: input, shape index: {}]
  %s4 = inlined_call_operand.vmem [shape: f32[1,128], index: 4, kind: input, shape index: {}]
  %s5 = inlined_call_operand.vmem [shape: bf16[128,128], index: 5, kind: input, shape index: {}]
  %s6 = inlined_call_operand.vmem [shape: f32[1,128], index: 6, kind: input, shape index: {}]
  %s7 = inlined_call_operand.vmem [shape: f32[256,128], index: 7, kind: output, shape index: {}]
  %s8 = sld [smem:[#allocation0]]
  $region61: #{net_forward.1} parent=0
    _
  %s10 = ssub.s32 1, %s8
  %s11 = scalar_select 0, %s10, %s8
  loop: start=0, step=1, limit=4
  $region2: #{net_forward.1} parent=0 // loop_pre_header
    _
  $region3: #{net_forward.1} parent=0 // loop_header
    %s13 = sphi 0, %s17
    %p14 = scmp.ge.s32.totalorder %s13, 4
    %s23 = sphi 0, %s25
    %s26 = sphi 0, %s23
    %s27 = sphi 0, %s26
    %s43 = sphi 0, %s27
    %s47 = sphi 0, %s47
    %s49 = sphi 0, %s47
    %s50 = sphi 0, %s49
    %s64 = sphi 0, %s50
    %s68 = sphi 0, %s68
    %s70 = sphi 0, %s68
    %s71 = sphi 0, %s70
    %s85 = sphi 0, %s71
    %s89 = sphi 0, %s89
    %s91 = sphi 0, %s89
    %s92 = sphi 0, %s91
    %s106 = sphi 0, %s92
    %s110 = sphi 0, %s110
    %s112 = sphi 0, %s110
    %s113 = sphi 0, %s112
    %s127 = sphi 0, %s113
    %s131 = sphi 0, %s131
    %s133 = sphi 0, %s131
    %s134 = sphi 0, %s133
    %s148 = sphi 0, %s134
    %s152 = sphi 0, %s152
    %s154 = sphi 0, %s152
    %s155 = sphi 0, %s154
    %s169 = sphi 0, %s155
    %s175 = sphi 0, %s177
    %s178 = sphi 0, %s175
    %s179 = sphi 0, %s178
    %s195 = sphi 0, %s179
  $region4: #{net_forward.1} parent=0 // loop_header_branch
    %16 = sbr.rel (%p14) target = $region8
  $region5: #{net_forward.1} parent=0 // loop_body
    %s18 = ssub.s32 %s13, 1
    %s19 = ssub.s32 %s13, 2
    %s20 = sadd.s32 %s13, 1
    %s21 = ssub.s32 %s13, %s20
    %p22 = scmp.eq.s32.totalorder %s21, 0
    %s24 = sadd.s32 %s23, 1
    %s25 = scalar_select %p22, %s23, %s24
    %p28 = pneg %p22
    %p29 = scmp.eq.s32.totalorder %s13, 1
    %p30 = por %p28, %p29
    %p31 = scmp.ne.s32.totalorder %s23, %s26
    %p32 = scmp.eq.s32.totalorder %s13, 0
    %p33 = por %p31, %p32
    %p34 = scmp.ne.s32.totalorder %s23, %s26
    %p35 = scmp.eq.s32.totalorder %s18, 1
    %p36 = por %p34, %p35
    %p37 = scmp.ne.s32.totalorder %s26, %s27
    %p38 = scmp.eq.s32.totalorder %s18, 0
    %p39 = por %p37, %p38
    %p40 = scmp.ne.s32.totalorder %s26, %s27
    %p41 = scmp.eq.s32.totalorder %s19, 1
    %p42 = por %p40, %p41
    %p44 = scmp.ne.s32.totalorder %s27, %s43
    %p45 = scmp.eq.s32.totalorder %s19, 0
    %p46 = por %p44, %p45
    %s48 = sadd.s32 %s47, 1
    %p51 = scmp.eq.s32.totalorder %s13, 1
    %p52 = scmp.ne.s32.totalorder %s47, %s49
    %p53 = scmp.eq.s32.totalorder %s13, 0
    %p54 = por %p52, %p53
    %p55 = scmp.ne.s32.totalorder %s47, %s49
    %p56 = scmp.eq.s32.totalorder %s18, 1
    %p57 = por %p55, %p56
    %p58 = scmp.ne.s32.totalorder %s49, %s50
    %p59 = scmp.eq.s32.totalorder %s18, 0
    %p60 = por %p58, %p59
    %p61 = scmp.ne.s32.totalorder %s49, %s50
    %p62 = scmp.eq.s32.totalorder %s19, 1
    %p63 = por %p61, %p62
    %p65 = scmp.ne.s32.totalorder %s50, %s64
    %p66 = scmp.eq.s32.totalorder %s19, 0
    %p67 = por %p65, %p66
    %s69 = sadd.s32 %s68, 1
    %p72 = scmp.eq.s32.totalorder %s13, 1
    %p73 = scmp.ne.s32.totalorder %s68, %s70
    %p74 = scmp.eq.s32.totalorder %s13, 0
    %p75 = por %p73, %p74
    %p76 = scmp.ne.s32.totalorder %s68, %s70
    %p77 = scmp.eq.s32.totalorder %s18, 1
    %p78 = por %p76, %p77
    %p79 = scmp.ne.s32.totalorder %s70, %s71
    %p80 = scmp.eq.s32.totalorder %s18, 0
    %p81 = por %p79, %p80
    %p82 = scmp.ne.s32.totalorder %s70, %s71
    %p83 = scmp.eq.s32.totalorder %s19, 1
    %p84 = por %p82, %p83
    %p86 = scmp.ne.s32.totalorder %s71, %s85
    %p87 = scmp.eq.s32.totalorder %s19, 0
    %p88 = por %p86, %p87
    %s90 = sadd.s32 %s89, 1
    %p93 = scmp.eq.s32.totalorder %s13, 1
    %p94 = scmp.ne.s32.totalorder %s89, %s91
    %p95 = scmp.eq.s32.totalorder %s13, 0
    %p96 = por %p94, %p95
    %p97 = scmp.ne.s32.totalorder %s89, %s91
    %p98 = scmp.eq.s32.totalorder %s18, 1
    %p99 = por %p97, %p98
    %p100 = scmp.ne.s32.totalorder %s91, %s92
    %p101 = scmp.eq.s32.totalorder %s18, 0
    %p102 = por %p100, %p101
    %p103 = scmp.ne.s32.totalorder %s91, %s92
    %p104 = scmp.eq.s32.totalorder %s19, 1
    %p105 = por %p103, %p104
    %p107 = scmp.ne.s32.totalorder %s92, %s106
    %p108 = scmp.eq.s32.totalorder %s19, 0
    %p109 = por %p107, %p108
    %s111 = sadd.s32 %s110, 1
    %p114 = scmp.eq.s32.totalorder %s13, 1
    %p115 = scmp.ne.s32.totalorder %s110, %s112
    %p116 = scmp.eq.s32.totalorder %s13, 0
    %p117 = por %p115, %p116
    %p118 = scmp.ne.s32.totalorder %s110, %s112
    %p119 = scmp.eq.s32.totalorder %s18, 1
    %p120 = por %p118, %p119
    %p121 = scmp.ne.s32.totalorder %s112, %s113
    %p122 = scmp.eq.s32.totalorder %s18, 0
    %p123 = por %p121, %p122
    %p124 = scmp.ne.s32.totalorder %s112, %s113
    %p125 = scmp.eq.s32.totalorder %s19, 1
    %p126 = por %p124, %p125
    %p128 = scmp.ne.s32.totalorder %s113, %s127
    %p129 = scmp.eq.s32.totalorder %s19, 0
    %p130 = por %p128, %p129
    %s132 = sadd.s32 %s131, 1
    %p135 = scmp.eq.s32.totalorder %s13, 1
    %p136 = scmp.ne.s32.totalorder %s131, %s133
    %p137 = scmp.eq.s32.totalorder %s13, 0
    %p138 = por %p136, %p137
    %p139 = scmp.ne.s32.totalorder %s131, %s133
    %p140 = scmp.eq.s32.totalorder %s18, 1
    %p141 = por %p139, %p140
    %p142 = scmp.ne.s32.totalorder %s133, %s134
    %p143 = scmp.eq.s32.totalorder %s18, 0
    %p144 = por %p142, %p143
    %p145 = scmp.ne.s32.totalorder %s133, %s134
    %p146 = scmp.eq.s32.totalorder %s19, 1
    %p147 = por %p145, %p146
    %p149 = scmp.ne.s32.totalorder %s134, %s148
    %p150 = scmp.eq.s32.totalorder %s19, 0
    %p151 = por %p149, %p150
    %s153 = sadd.s32 %s152, 1
    %p156 = scmp.eq.s32.totalorder %s13, 1
    %p157 = scmp.ne.s32.totalorder %s152, %s154
    %p158 = scmp.eq.s32.totalorder %s13, 0
    %p159 = por %p157, %p158
    %p160 = scmp.ne.s32.totalorder %s152, %s154
    %p161 = scmp.eq.s32.totalorder %s18, 1
    %p162 = por %p160, %p161
    %p163 = scmp.ne.s32.totalorder %s154, %s155
    %p164 = scmp.eq.s32.totalorder %s18, 0
    %p165 = por %p163, %p164
    %p166 = scmp.ne.s32.totalorder %s154, %s155
    %p167 = scmp.eq.s32.totalorder %s19, 1
    %p168 = por %p166, %p167
    %p170 = scmp.ne.s32.totalorder %s155, %s169
    %p171 = scmp.eq.s32.totalorder %s19, 0
    %p172 = por %p170, %p171
    %s173 = ssub.s32 %s13, %s20
    %p174 = scmp.eq.s32.totalorder %s173, 0
    %s176 = sadd.s32 %s175, 1
    %s177 = scalar_select %p174, %s175, %s176
    %p180 = pneg %p174
    %p181 = scmp.eq.s32.totalorder %s13, 1
    %p182 = por %p180, %p181
    %p183 = scmp.ne.s32.totalorder %s175, %s178
    %p184 = scmp.eq.s32.totalorder %s13, 0
    %p185 = por %p183, %p184
    %p186 = scmp.ne.s32.totalorder %s175, %s178
    %p187 = scmp.eq.s32.totalorder %s18, 1
    %p188 = por %p186, %p187
    %p189 = scmp.ne.s32.totalorder %s178, %s179
    %p190 = scmp.eq.s32.totalorder %s18, 0
    %p191 = por %p189, %p190
    %p192 = scmp.ne.s32.totalorder %s178, %s179
    %p193 = scmp.eq.s32.totalorder %s19, 1
    %p194 = por %p192, %p193
    %p196 = scmp.ne.s32.totalorder %s179, %s195
    %p197 = scmp.eq.s32.totalorder %s19, 0
    %p198 = por %p196, %p197
    %p199 = scmp.le.s32.totalorder 1, %s13
    %p200 = scmp.lt.s32.totalorder %s13, 3
    %p201 = pnand %p199, %p200
    %p202 = pneg %p201
    // Predicated region
    $region9: #{net_forward.1} parent=5 // pred_check
      _
    $region10: #{net_forward.1} parent=5 // pred_check_branch
      %204 = sbr.rel (%p201) target = $region12
    $region11: #{net_forward.1} parent=5 // pred_region
      %s205 = ssub.s32 %s13, 1
      // Predicated region
      $region13: #{net_forward.1} parent=11 // pred_check
        %p206 = pneg %p60
      $region14: #{net_forward.1} parent=11 // pred_check_branch
        %208 = sbr.rel (%p206) target = $region16
      $region15: #{net_forward.1} parent=11 // pred_region
        _
      $region16: #{net_forward.1} parent=11 // pred_fallthru
        _
      // Predicated region
      $region17: #{net_forward.1} parent=11 // pred_check
        %p209 = pneg %p81
      $region18: #{net_forward.1} parent=11 // pred_check_branch
        %211 = sbr.rel (%p209) target = $region20
      $region19: #{net_forward.1} parent=11 // pred_region
        _
      $region20: #{net_forward.1} parent=11 // pred_fallthru
        _
      // Predicated region
      $region21: #{net_forward.1} parent=11 // pred_check
        %p212 = pneg %p102
      $region22: #{net_forward.1} parent=11 // pred_check_branch
        %214 = sbr.rel (%p212) target = $region24
      $region23: #{net_forward.1} parent=11 // pred_region
        _
      $region24: #{net_forward.1} parent=11 // pred_fallthru
        _
      // Predicated region
      $region25: #{net_forward.1} parent=11 // pred_check
        %p215 = pneg %p123
      $region26: #{net_forward.1} parent=11 // pred_check_branch
        %217 = sbr.rel (%p215) target = $region28
      $region27: #{net_forward.1} parent=11 // pred_region
        _
      $region28: #{net_forward.1} parent=11 // pred_fallthru
        _
      // Predicated region
      $region29: #{net_forward.1} parent=11 // pred_check
        %p218 = pneg %p144
      $region30: #{net_forward.1} parent=11 // pred_check_branch
        %220 = sbr.rel (%p218) target = $region32
      $region31: #{net_forward.1} parent=11 // pred_region
        _
      $region32: #{net_forward.1} parent=11 // pred_fallthru
        _
      // Predicated region
      $region33: #{net_forward.1} parent=11 // pred_check
        %p221 = pneg %p165
      $region34: #{net_forward.1} parent=11 // pred_check_branch
        %223 = sbr.rel (%p221) target = $region36
      $region35: #{net_forward.1} parent=11 // pred_region
        _
      $region36: #{net_forward.1} parent=11 // pred_fallthru
        _
    $region12: #{net_forward.1} parent=5 // pred_fallthru
      _
    %p224 = scmp.lt.s32.totalorder %s13, 2
    // Predicated region
    $region37: #{net_forward.1} parent=5 // pred_check
      %p225 = pneg %p224
    $region38: #{net_forward.1} parent=5 // pred_check_branch
      %227 = sbr.rel (%p225) target = $region40
    $region39: #{net_forward.1} parent=5 // pred_region
      // Predicated region
      $region41: #{net_forward.1} parent=39 // pred_check
        %p228 = pneg %p33
      $region42: #{net_forward.1} parent=39 // pred_check_branch
        %230 = sbr.rel (%p228) target = $region44
      $region43: #{net_forward.1} parent=39 // pred_region
        %s231 = smul.u32 16, %s13
        %p232 = scmp.lt.s32.totalorder %s231, 31
        %s233 = scalar_select %p232, %s231, 31
        %s234 = smul.addr %s233, 4
        %s235 = scalar_lea.vmem %s0, %s234
        %s236 = smul.u32 16, %s13
      $region44: #{net_forward.1} parent=39 // pred_fallthru
        _
    $region40: #{net_forward.1} parent=5 // pred_fallthru
      _
    %p237 = scmp.le.s32.totalorder 1, %s13
    %p238 = scmp.lt.s32.totalorder %s13, 3
    %p239 = pnand %p237, %p238
    %p240 = pneg %p239
    // Predicated region
    $region45: #{net_forward.1} parent=5 // pred_check
      _
    $region46: #{net_forward.1} parent=5 // pred_check_branch
      %242 = sbr.rel (%p239) target = $region48
    $region47: #{net_forward.1} parent=5 // pred_region
      %s243 = ssub.s32 %s13, 1
      %s244 = smul.u32 16, %s18
      %p245 = scmp.lt.s32.totalorder %s244, 31
      %s246 = scalar_select %p245, %s244, 31
      %s247 = smul.addr %s246, 4
      %s248 = scalar_lea.vmem %s0, %s247
      %p249 = pneg %p39
      %p250 = pneg %p36
      %p251 = pneg %p60
      %p252 = pneg %p57
      %p253 = pneg %p81
      %p254 = pneg %p78
      %p255 = pneg %p102
      %p256 = pneg %p99
      %p257 = pneg %p123
      %p258 = pneg %p120
      %p259 = pneg %p144
      %p260 = pneg %p141
      %p261 = pneg %p165
      %p262 = pneg %p162
      %p263 = pneg %p191
      %p264 = pneg %p188
      %s265 = smul.u32 16, %s18
      %p266 = scmp.lt.s32.totalorder %s265, 31
      %s267 = scalar_select %p266, %s265, 31
      %s268 = smul.addr %s267, 8
      %s269 = scalar_lea.vmem %s7, %s268
      %s270 = smul.u32 16, %s18
      %p271 = scmp.lt.s32.totalorder %s270, 31
      %s272 = scalar_select %p271, %s270, 31
      %s273 = smul.addr %s272, 4
      %s274 = scalar_lea.vmem %s0, %s273
      %s275 = smul.u32 16, %s18
      %s276 = smul.u32 16, %s18
      %p277 = scmp.lt.s32.totalorder %s276, 31
      %s278 = scalar_select %p277, %s276, 31
      %s279 = smul.addr %s278, 8
      %s280 = scalar_lea.vmem %s7, %s279
      %s281 = smul.u32 16, %s18
      %v283 = vld [vmem:[%s274] sm:$0xf]
      %v284 = vld [vmem:[%s274 + $0x4] sm:$0xf]
      %v285 = vld [vmem:[%s274 + $0x8] sm:$0xf]
      %v286 = vld [vmem:[%s274 + $0xc] sm:$0xf]
      %v287 = vld [vmem:[%s274 + $0x10] sm:$0xf]
      %v288 = vld [vmem:[%s274 + $0x14] sm:$0xf]
      %v289 = vld [vmem:[%s274 + $0x18] sm:$0xf]
      %v290 = vld [vmem:[%s274 + $0x1c] sm:$0xf]
      %v291 = vld [vmem:[%s274 + $0x20] sm:$0xf]
      %v292 = vld [vmem:[%s274 + $0x24] sm:$0xf]
      %v293 = vld [vmem:[%s274 + $0x28] sm:$0xf]
      %v294 = vld [vmem:[%s274 + $0x2c] sm:$0xf]
      %v295 = vld [vmem:[%s274 + $0x30] sm:$0xf]
      %v296 = vld [vmem:[%s274 + $0x34] sm:$0xf]
      %v297 = vld [vmem:[%s274 + $0x38] sm:$0xf]
      %v298 = vld [vmem:[%s274 + $0x3c] sm:$0xf]
      %v299 = vld [vmem:[%s1] sm:$0xf]
      %v300 = vld [vmem:[%s1 + $0x4] sm:$0xf]
      %v301 = vld [vmem:[%s1 + $0x8] sm:$0xf]
      %v302 = vld [vmem:[%s1 + $0xc] sm:$0xf]
      %v303 = vld [vmem:[%s2] sm:$0x1]
      %v305 = vperm.slane %v303, 0
      %v323 = vunpack.c.l.b16 %v283
      %v324 = vunpack.c.l.b16 %v284
      %v325 = vunpack.c.l.b16 %v285
      %v326 = vunpack.c.l.b16 %v286
      %v327 = vunpack.c.l.b16 %v287
      %v328 = vunpack.c.l.b16 %v288
      %v329 = vunpack.c.l.b16 %v289
      %v330 = vunpack.c.l.b16 %v290
      %v331 = vunpack.c.l.b16 %v291
      %v332 = vunpack.c.l.b16 %v292
      %v333 = vunpack.c.l.b16 %v293
      %v334 = vunpack.c.l.b16 %v294
      %v335 = vunpack.c.l.b16 %v295
      %v336 = vunpack.c.l.b16 %v296
      %v337 = vunpack.c.l.b16 %v297
      %v338 = vunpack.c.l.b16 %v298
      %v339 = vpack.c.b16 %v324, %v323
      %v340 = vpack.c.b16 %v326, %v325
      %v341 = vpack.c.b16 %v328, %v327
      %v342 = vpack.c.b16 %v330, %v329
      %v343 = vpack.c.b16 %v332, %v331
      %v344 = vpack.c.b16 %v334, %v333
      %v345 = vpack.c.b16 %v336, %v335
      %v346 = vpack.c.b16 %v338, %v337
      %v351 = vunpack.c.l.b16 %v299
      %v352 = vunpack.c.l.b16 %v300
      %v353 = vunpack.c.l.b16 %v301
      %v354 = vunpack.c.l.b16 %v302
      %v355 = vpack.c.b16 %v352, %v351
      %v356 = vpack.c.b16 %v354, %v353
      %vm359 = vcmask 261120
      %v361 = vsel %vm359, %v339, 0
      %v364 = vsel %vm359, %v340, 0
      %v367 = vsel %vm359, %v341, 0
      %v370 = vsel %vm359, %v342, 0
      %v373 = vsel %vm359, %v343, 0
      %v376 = vsel %vm359, %v344, 0
      %v379 = vsel %vm359, %v345, 0
      %v382 = vsel %vm359, %v346, 0
      %384 = vmatpush.bf16.msra.mxu0 0
      %385 = vmatpush.bf16.msra.mxu0 0
      %386 = vmatpush.bf16.msra.mxu0 0
      %387 = vmatpush.bf16.msra.mxu0 0
      %388 = vmatpush.bf16.msra.mxu0 0
      %389 = vmatpush.bf16.msra.mxu0 0
      %390 = vmatpush.bf16.msra.mxu0 %v356
      %391 = vmatpush.bf16.msra.mxu0 %v355
      %392 = vmatmul.bf16.gmra.mxu0 %v361
      %v393 = vpop.f32.mrf.mxu0
      %v394 = vadd.f32 %v305, %v393
      %v395 = vpop.f32.mrf.mxu0
      %v396 = vadd.f32 %v305, %v395
      %397 = vmatmul.bf16.gmra.mxu0 %v364
      %v398 = vpop.f32.mrf.mxu0
      %v399 = vadd.f32 %v305, %v398
      %v400 = vpop.f32.mrf.mxu0
      %v401 = vadd.f32 %v305, %v400
      %402 = vmatmul.bf16.gmra.mxu0 %v367
      %v403 = vpop.f32.mrf.mxu0
      %v404 = vadd.f32 %v305, %v403
      %v405 = vpop.f32.mrf.mxu0
      %v406 = vadd.f32 %v305, %v405
      %407 = vmatmul.bf16.gmra.mxu0 %v370
      %v408 = vpop.f32.mrf.mxu0
      %v409 = vadd.f32 %v305, %v408
      %v410 = vpop.f32.mrf.mxu0
      %v411 = vadd.f32 %v305, %v410
      %412 = vmatmul.bf16.gmra.mxu0 %v373
      %v413 = vpop.f32.mrf.mxu0
      %v414 = vadd.f32 %v305, %v413
      %v415 = vpop.f32.mrf.mxu0
      %v416 = vadd.f32 %v305, %v415
      %417 = vmatmul.bf16.gmra.mxu0 %v376
      %v418 = vpop.f32.mrf.mxu0
      %v419 = vadd.f32 %v305, %v418
      %v420 = vpop.f32.mrf.mxu0
      %v421 = vadd.f32 %v305, %v420
      %422 = vmatmul.bf16.gmra.mxu0 %v379
      %v423 = vpop.f32.mrf.mxu0
      %v424 = vadd.f32 %v305, %v423
      %v425 = vpop.f32.mrf.mxu0
      %v426 = vadd.f32 %v305, %v425
      %427 = vmatmul.bf16.gmra.mxu0 %v382
      %v428 = vpop.f32.mrf.mxu0
      %v429 = vadd.f32 %v305, %v428
      %v430 = vpop.f32.mrf.mxu0
      %v431 = vadd.f32 %v305, %v430
      %432 = vdwg.mxu0
      %v433 = vmax.f32 %v394, 0.0
      %v434 = vmax.f32 %v396, 0.0
      %v435 = vmax.f32 %v399, 0.0
      %v436 = vmax.f32 %v401, 0.0
      %v437 = vmax.f32 %v404, 0.0
      %v438 = vmax.f32 %v406, 0.0
      %v439 = vmax.f32 %v409, 0.0
      %v440 = vmax.f32 %v411, 0.0
      %v441 = vmax.f32 %v414, 0.0
      %v442 = vmax.f32 %v416, 0.0
      %v443 = vmax.f32 %v419, 0.0
      %v444 = vmax.f32 %v421, 0.0
      %v445 = vmax.f32 %v424, 0.0
      %v446 = vmax.f32 %v426, 0.0
      %v447 = vmax.f32 %v429, 0.0
      %v448 = vmax.f32 %v431, 0.0
      %v449 = vpack.c.bf16 %v434, %v433
      %v450 = vpack.c.bf16 %v436, %v435
      %v451 = vpack.c.bf16 %v438, %v437
      %v452 = vpack.c.bf16 %v440, %v439
      %v453 = vpack.c.bf16 %v442, %v441
      %v454 = vpack.c.bf16 %v444, %v443
      %v455 = vpack.c.bf16 %v446, %v445
      %v456 = vpack.c.bf16 %v448, %v447
      %v457 = vld [vmem:[%s3] sm:$0xf]
      %v458 = vld [vmem:[%s3 + $0x4] sm:$0xf]
      %v459 = vld [vmem:[%s3 + $0x8] sm:$0xf]
      %v460 = vld [vmem:[%s3 + $0xc] sm:$0xf]
      %v461 = vld [vmem:[%s3 + $0x10] sm:$0xf]
      %v462 = vld [vmem:[%s3 + $0x14] sm:$0xf]
      %v463 = vld [vmem:[%s3 + $0x18] sm:$0xf]
      %v464 = vld [vmem:[%s3 + $0x1c] sm:$0xf]
      %v465 = vld [vmem:[%s3 + $0x20] sm:$0xf]
      %v466 = vld [vmem:[%s3 + $0x24] sm:$0xf]
      %v467 = vld [vmem:[%s3 + $0x28] sm:$0xf]
      %v468 = vld [vmem:[%s3 + $0x2c] sm:$0xf]
      %v469 = vld [vmem:[%s3 + $0x30] sm:$0xf]
      %v470 = vld [vmem:[%s3 + $0x34] sm:$0xf]
      %v471 = vld [vmem:[%s3 + $0x38] sm:$0xf]
      %v472 = vld [vmem:[%s3 + $0x3c] sm:$0xf]
      %v473 = vld [vmem:[%s4] sm:$0x1]
      %v475 = vperm.slane %v473, 0
      %v493 = vunpack.c.l.b16 %v457
      %v494 = vunpack.c.l.b16 %v458
      %v495 = vunpack.c.l.b16 %v459
      %v496 = vunpack.c.l.b16 %v460
      %v497 = vunpack.c.l.b16 %v461
      %v498 = vunpack.c.l.b16 %v462
      %v499 = vunpack.c.l.b16 %v463
      %v500 = vunpack.c.l.b16 %v464
      %v501 = vunpack.c.l.b16 %v465
      %v502 = vunpack.c.l.b16 %v466
      %v503 = vunpack.c.l.b16 %v467
      %v504 = vunpack.c.l.b16 %v468
      %v505 = vunpack.c.l.b16 %v469
      %v506 = vunpack.c.l.b16 %v470
      %v507 = vunpack.c.l.b16 %v471
      %v508 = vunpack.c.l.b16 %v472
      %v509 = vpack.c.b16 %v494, %v493
      %v510 = vpack.c.b16 %v496, %v495
      %v511 = vpack.c.b16 %v498, %v497
      %v512 = vpack.c.b16 %v500, %v499
      %v513 = vpack.c.b16 %v502, %v501
      %v514 = vpack.c.b16 %v504, %v503
      %v515 = vpack.c.b16 %v506, %v505
      %v516 = vpack.c.b16 %v508, %v507
      %525 = vmatpush.bf16.msra.mxu0 %v516
      %526 = vmatpush.bf16.msra.mxu0 %v515
      %527 = vmatpush.bf16.msra.mxu0 %v514
      %528 = vmatpush.bf16.msra.mxu0 %v513
      %529 = vmatpush.bf16.msra.mxu0 %v512
      %530 = vmatpush.bf16.msra.mxu0 %v511
      %531 = vmatpush.bf16.msra.mxu0 %v510
      %532 = vmatpush.bf16.msra.mxu0 %v509
      %533 = vmatmul.bf16.gmra.mxu0 %v449
      %v534 = vpop.f32.mrf.mxu0
      %v535 = vadd.f32 %v475, %v534
      %v536 = vpop.f32.mrf.mxu0
      %v537 = vadd.f32 %v475, %v536
      %538 = vmatmul.bf16.gmra.mxu0 %v450
      %v539 = vpop.f32.mrf.mxu0
      %v540 = vadd.f32 %v475, %v539
      %v541 = vpop.f32.mrf.mxu0
      %v542 = vadd.f32 %v475, %v541
      %543 = vmatmul.bf16.gmra.mxu0 %v451
      %v544 = vpop.f32.mrf.mxu0
      %v545 = vadd.f32 %v475, %v544
      %v546 = vpop.f32.mrf.mxu0
      %v547 = vadd.f32 %v475, %v546
      %548 = vmatmul.bf16.gmra.mxu0 %v452
      %v549 = vpop.f32.mrf.mxu0
      %v550 = vadd.f32 %v475, %v549
      %v551 = vpop.f32.mrf.mxu0
      %v552 = vadd.f32 %v475, %v551
      %553 = vmatmul.bf16.gmra.mxu0 %v453
      %v554 = vpop.f32.mrf.mxu0
      %v555 = vadd.f32 %v475, %v554
      %v556 = vpop.f32.mrf.mxu0
      %v557 = vadd.f32 %v475, %v556
      %558 = vmatmul.bf16.gmra.mxu0 %v454
      %v559 = vpop.f32.mrf.mxu0
      %v560 = vadd.f32 %v475, %v559
      %v561 = vpop.f32.mrf.mxu0
      %v562 = vadd.f32 %v475, %v561
      %563 = vmatmul.bf16.gmra.mxu0 %v455
      %v564 = vpop.f32.mrf.mxu0
      %v565 = vadd.f32 %v475, %v564
      %v566 = vpop.f32.mrf.mxu0
      %v567 = vadd.f32 %v475, %v566
      %568 = vmatmul.bf16.gmra.mxu0 %v456
      %v569 = vpop.f32.mrf.mxu0
      %v570 = vadd.f32 %v475, %v569
      %v571 = vpop.f32.mrf.mxu0
      %v572 = vadd.f32 %v475, %v571
      %573 = vdwg.mxu0
      %v574 = vxor.u32 %v535, 2147483648
      %v575 = vxor.u32 %v537, 2147483648
      %v576 = vxor.u32 %v540, 2147483648
      %v577 = vxor.u32 %v542, 2147483648
      %v578 = vxor.u32 %v545, 2147483648
      %v579 = vxor.u32 %v547, 2147483648
      %v580 = vxor.u32 %v550, 2147483648
      %v581 = vxor.u32 %v552, 2147483648
      %v582 = vxor.u32 %v555, 2147483648
      %v583 = vxor.u32 %v557, 2147483648
      %v584 = vxor.u32 %v560, 2147483648
      %v585 = vxor.u32 %v562, 2147483648
      %v586 = vxor.u32 %v565, 2147483648
      %v587 = vxor.u32 %v567, 2147483648
      %v588 = vxor.u32 %v570, 2147483648
      %v589 = vxor.u32 %v572, 2147483648
      %v590 = vmul.f32 %v574, 1.442695
      %v591 = vpow.pop %v590
      %v592 = vmul.f32 %v575, 1.442695
      %v593 = vpow.pop %v592
      %v594 = vmul.f32 %v576, 1.442695
      %v595 = vpow.pop %v594
      %v596 = vmul.f32 %v577, 1.442695
      %v597 = vpow.pop %v596
      %v598 = vmul.f32 %v578, 1.442695
      %v599 = vpow.pop %v598
      %v600 = vmul.f32 %v579, 1.442695
      %v601 = vpow.pop %v600
      %v602 = vmul.f32 %v580, 1.442695
      %v603 = vpow.pop %v602
      %v604 = vmul.f32 %v581, 1.442695
      %v605 = vpow.pop %v604
      %v606 = vmul.f32 %v582, 1.442695
      %v607 = vpow.pop %v606
      %v608 = vmul.f32 %v583, 1.442695
      %v609 = vpow.pop %v608
      %v610 = vmul.f32 %v584, 1.442695
      %v611 = vpow.pop %v610
      %v612 = vmul.f32 %v585, 1.442695
      %v613 = vpow.pop %v612
      %v614 = vmul.f32 %v586, 1.442695
      %v615 = vpow.pop %v614
      %v616 = vmul.f32 %v587, 1.442695
      %v617 = vpow.pop %v616
      %v618 = vmul.f32 %v588, 1.442695
      %v619 = vpow.pop %v618
      %v620 = vmul.f32 %v589, 1.442695
      %v621 = vpow.pop %v620
      %v622 = vadd.f32 %v591, 1.0
      %v623 = vadd.f32 %v593, 1.0
      %v624 = vadd.f32 %v595, 1.0
      %v625 = vadd.f32 %v597, 1.0
      %v626 = vadd.f32 %v599, 1.0
      %v627 = vadd.f32 %v601, 1.0
      %v628 = vadd.f32 %v603, 1.0
      %v629 = vadd.f32 %v605, 1.0
      %v630 = vadd.f32 %v607, 1.0
      %v631 = vadd.f32 %v609, 1.0
      %v632 = vadd.f32 %v611, 1.0
      %v633 = vadd.f32 %v613, 1.0
      %v634 = vadd.f32 %v615, 1.0
      %v635 = vadd.f32 %v617, 1.0
      %v636 = vadd.f32 %v619, 1.0
      %v637 = vadd.f32 %v621, 1.0
      %v638 = vrcp.pop %v622
      %v639 = vmul.f32 %v622, %v638
      %v640 = vsub.f32 1.0, %v639
      %v641 = vmul.f32 %v638, %v640
      %v642 = vadd.f32 %v638, %v641
      %vm643 = vweird.f32 %v622
      %vm644 = vweird.f32 %v638
      %vm645 = vmor %vm643, %vm644
      %v646 = vsel %vm645, %v638, %v642
      %v647 = vand.u32 2147483647, %v622
      %vm648 = vcmp.eq.f32.partialorder %v647, 8.507059e+37
      %v649 = vand.u32 %v622, 2147483648
      %v650 = vor.u32 1.1754944e-38, %v649
      %v651 = vsel %vm648, %v650, %v646
      %v652 = vmul.f32 1.0, %v651
      %v653 = vrcp.pop %v623
      %v654 = vmul.f32 %v623, %v653
      %v655 = vsub.f32 1.0, %v654
      %v656 = vmul.f32 %v653, %v655
      %v657 = vadd.f32 %v653, %v656
      %vm658 = vweird.f32 %v623
      %vm659 = vweird.f32 %v653
      %vm660 = vmor %vm658, %vm659
      %v661 = vsel %vm660, %v653, %v657
      %v662 = vand.u32 2147483647, %v623
      %vm663 = vcmp.eq.f32.partialorder %v662, 8.507059e+37
      %v664 = vand.u32 %v623, 2147483648
      %v665 = vor.u32 1.1754944e-38, %v664
      %v666 = vsel %vm663, %v665, %v661
      %v667 = vmul.f32 1.0, %v666
      %v668 = vrcp.pop %v624
      %v669 = vmul.f32 %v624, %v668
      %v670 = vsub.f32 1.0, %v669
      %v671 = vmul.f32 %v668, %v670
      %v672 = vadd.f32 %v668, %v671
      %vm673 = vweird.f32 %v624
      %vm674 = vweird.f32 %v668
      %vm675 = vmor %vm673, %vm674
      %v676 = vsel %vm675, %v668, %v672
      %v677 = vand.u32 2147483647, %v624
      %vm678 = vcmp.eq.f32.partialorder %v677, 8.507059e+37
      %v679 = vand.u32 %v624, 2147483648
      %v680 = vor.u32 1.1754944e-38, %v679
      %v681 = vsel %vm678, %v680, %v676
      %v682 = vmul.f32 1.0, %v681
      %v683 = vrcp.pop %v625
      %v684 = vmul.f32 %v625, %v683
      %v685 = vsub.f32 1.0, %v684
      %v686 = vmul.f32 %v683, %v685
      %v687 = vadd.f32 %v683, %v686
      %vm688 = vweird.f32 %v625
      %vm689 = vweird.f32 %v683
      %vm690 = vmor %vm688, %vm689
      %v691 = vsel %vm690, %v683, %v687
      %v692 = vand.u32 2147483647, %v625
      %vm693 = vcmp.eq.f32.partialorder %v692, 8.507059e+37
      %v694 = vand.u32 %v625, 2147483648
      %v695 = vor.u32 1.1754944e-38, %v694
      %v696 = vsel %vm693, %v695, %v691
      %v697 = vmul.f32 1.0, %v696
      %v698 = vrcp.pop %v626
      %v699 = vmul.f32 %v626, %v698
      %v700 = vsub.f32 1.0, %v699
      %v701 = vmul.f32 %v698, %v700
      %v702 = vadd.f32 %v698, %v701
      %vm703 = vweird.f32 %v626
      %vm704 = vweird.f32 %v698
      %vm705 = vmor %vm703, %vm704
      %v706 = vsel %vm705, %v698, %v702
      %v707 = vand.u32 2147483647, %v626
      %vm708 = vcmp.eq.f32.partialorder %v707, 8.507059e+37
      %v709 = vand.u32 %v626, 2147483648
      %v710 = vor.u32 1.1754944e-38, %v709
      %v711 = vsel %vm708, %v710, %v706
      %v712 = vmul.f32 1.0, %v711
      %v713 = vrcp.pop %v627
      %v714 = vmul.f32 %v627, %v713
      %v715 = vsub.f32 1.0, %v714
      %v716 = vmul.f32 %v713, %v715
      %v717 = vadd.f32 %v713, %v716
      %vm718 = vweird.f32 %v627
      %vm719 = vweird.f32 %v713
      %vm720 = vmor %vm718, %vm719
      %v721 = vsel %vm720, %v713, %v717
      %v722 = vand.u32 2147483647, %v627
      %vm723 = vcmp.eq.f32.partialorder %v722, 8.507059e+37
      %v724 = vand.u32 %v627, 2147483648
      %v725 = vor.u32 1.1754944e-38, %v724
      %v726 = vsel %vm723, %v725, %v721
      %v727 = vmul.f32 1.0, %v726
      %v728 = vrcp.pop %v628
      %v729 = vmul.f32 %v628, %v728
      %v730 = vsub.f32 1.0, %v729
      %v731 = vmul.f32 %v728, %v730
      %v732 = vadd.f32 %v728, %v731
      %vm733 = vweird.f32 %v628
      %vm734 = vweird.f32 %v728
      %vm735 = vmor %vm733, %vm734
      %v736 = vsel %vm735, %v728, %v732
      %v737 = vand.u32 2147483647, %v628
      %vm738 = vcmp.eq.f32.partialorder %v737, 8.507059e+37
      %v739 = vand.u32 %v628, 2147483648
      %v740 = vor.u32 1.1754944e-38, %v739
      %v741 = vsel %vm738, %v740, %v736
      %v742 = vmul.f32 1.0, %v741
      %v743 = vrcp.pop %v629
      %v744 = vmul.f32 %v629, %v743
      %v745 = vsub.f32 1.0, %v744
      %v746 = vmul.f32 %v743, %v745
      %v747 = vadd.f32 %v743, %v746
      %vm748 = vweird.f32 %v629
      %vm749 = vweird.f32 %v743
      %vm750 = vmor %vm748, %vm749
      %v751 = vsel %vm750, %v743, %v747
      %v752 = vand.u32 2147483647, %v629
      %vm753 = vcmp.eq.f32.partialorder %v752, 8.507059e+37
      %v754 = vand.u32 %v629, 2147483648
      %v755 = vor.u32 1.1754944e-38, %v754
      %v756 = vsel %vm753, %v755, %v751
      %v757 = vmul.f32 1.0, %v756
      %v758 = vrcp.pop %v630
      %v759 = vmul.f32 %v630, %v758
      %v760 = vsub.f32 1.0, %v759
      %v761 = vmul.f32 %v758, %v760
      %v762 = vadd.f32 %v758, %v761
      %vm763 = vweird.f32 %v630
      %vm764 = vweird.f32 %v758
      %vm765 = vmor %vm763, %vm764
      %v766 = vsel %vm765, %v758, %v762
      %v767 = vand.u32 2147483647, %v630
      %vm768 = vcmp.eq.f32.partialorder %v767, 8.507059e+37
      %v769 = vand.u32 %v630, 2147483648
      %v770 = vor.u32 1.1754944e-38, %v769
      %v771 = vsel %vm768, %v770, %v766
      %v772 = vmul.f32 1.0, %v771
      %v773 = vrcp.pop %v631
      %v774 = vmul.f32 %v631, %v773
      %v775 = vsub.f32 1.0, %v774
      %v776 = vmul.f32 %v773, %v775
      %v777 = vadd.f32 %v773, %v776
      %vm778 = vweird.f32 %v631
      %vm779 = vweird.f32 %v773
      %vm780 = vmor %vm778, %vm779
      %v781 = vsel %vm780, %v773, %v777
      %v782 = vand.u32 2147483647, %v631
      %vm783 = vcmp.eq.f32.partialorder %v782, 8.507059e+37
      %v784 = vand.u32 %v631, 2147483648
      %v785 = vor.u32 1.1754944e-38, %v784
      %v786 = vsel %vm783, %v785, %v781
      %v787 = vmul.f32 1.0, %v786
      %v788 = vrcp.pop %v632
      %v789 = vmul.f32 %v632, %v788
      %v790 = vsub.f32 1.0, %v789
      %v791 = vmul.f32 %v788, %v790
      %v792 = vadd.f32 %v788, %v791
      %vm793 = vweird.f32 %v632
      %vm794 = vweird.f32 %v788
      %vm795 = vmor %vm793, %vm794
      %v796 = vsel %vm795, %v788, %v792
      %v797 = vand.u32 2147483647, %v632
      %vm798 = vcmp.eq.f32.partialorder %v797, 8.507059e+37
      %v799 = vand.u32 %v632, 2147483648
      %v800 = vor.u32 1.1754944e-38, %v799
      %v801 = vsel %vm798, %v800, %v796
      %v802 = vmul.f32 1.0, %v801
      %v803 = vrcp.pop %v633
      %v804 = vmul.f32 %v633, %v803
      %v805 = vsub.f32 1.0, %v804
      %v806 = vmul.f32 %v803, %v805
      %v807 = vadd.f32 %v803, %v806
      %vm808 = vweird.f32 %v633
      %vm809 = vweird.f32 %v803
      %vm810 = vmor %vm808, %vm809
      %v811 = vsel %vm810, %v803, %v807
      %v812 = vand.u32 2147483647, %v633
      %vm813 = vcmp.eq.f32.partialorder %v812, 8.507059e+37
      %v814 = vand.u32 %v633, 2147483648
      %v815 = vor.u32 1.1754944e-38, %v814
      %v816 = vsel %vm813, %v815, %v811
      %v817 = vmul.f32 1.0, %v816
      %v818 = vrcp.pop %v634
      %v819 = vmul.f32 %v634, %v818
      %v820 = vsub.f32 1.0, %v819
      %v821 = vmul.f32 %v818, %v820
      %v822 = vadd.f32 %v818, %v821
      %vm823 = vweird.f32 %v634
      %vm824 = vweird.f32 %v818
      %vm825 = vmor %vm823, %vm824
      %v826 = vsel %vm825, %v818, %v822
      %v827 = vand.u32 2147483647, %v634
      %vm828 = vcmp.eq.f32.partialorder %v827, 8.507059e+37
      %v829 = vand.u32 %v634, 2147483648
      %v830 = vor.u32 1.1754944e-38, %v829
      %v831 = vsel %vm828, %v830, %v826
      %v832 = vmul.f32 1.0, %v831
      %v833 = vrcp.pop %v635
      %v834 = vmul.f32 %v635, %v833
      %v835 = vsub.f32 1.0, %v834
      %v836 = vmul.f32 %v833, %v835
      %v837 = vadd.f32 %v833, %v836
      %vm838 = vweird.f32 %v635
      %vm839 = vweird.f32 %v833
      %vm840 = vmor %vm838, %vm839
      %v841 = vsel %vm840, %v833, %v837
      %v842 = vand.u32 2147483647, %v635
      %vm843 = vcmp.eq.f32.partialorder %v842, 8.507059e+37
      %v844 = vand.u32 %v635, 2147483648
      %v845 = vor.u32 1.1754944e-38, %v844
      %v846 = vsel %vm843, %v845, %v841
      %v847 = vmul.f32 1.0, %v846
      %v848 = vrcp.pop %v636
      %v849 = vmul.f32 %v636, %v848
      %v850 = vsub.f32 1.0, %v849
      %v851 = vmul.f32 %v848, %v850
      %v852 = vadd.f32 %v848, %v851
      %vm853 = vweird.f32 %v636
      %vm854 = vweird.f32 %v848
      %vm855 = vmor %vm853, %vm854
      %v856 = vsel %vm855, %v848, %v852
      %v857 = vand.u32 2147483647, %v636
      %vm858 = vcmp.eq.f32.partialorder %v857, 8.507059e+37
      %v859 = vand.u32 %v636, 2147483648
      %v860 = vor.u32 1.1754944e-38, %v859
      %v861 = vsel %vm858, %v860, %v856
      %v862 = vmul.f32 1.0, %v861
      %v863 = vrcp.pop %v637
      %v864 = vmul.f32 %v637, %v863
      %v865 = vsub.f32 1.0, %v864
      %v866 = vmul.f32 %v863, %v865
      %v867 = vadd.f32 %v863, %v866
      %vm868 = vweird.f32 %v637
      %vm869 = vweird.f32 %v863
      %vm870 = vmor %vm868, %vm869
      %v871 = vsel %vm870, %v863, %v867
      %v872 = vand.u32 2147483647, %v637
      %vm873 = vcmp.eq.f32.partialorder %v872, 8.507059e+37
      %v874 = vand.u32 %v637, 2147483648
      %v875 = vor.u32 1.1754944e-38, %v874
      %v876 = vsel %vm873, %v875, %v871
      %v877 = vmul.f32 1.0, %v876
      %v878 = vpack.c.bf16 %v667, %v652
      %v879 = vpack.c.bf16 %v697, %v682
      %v880 = vpack.c.bf16 %v727, %v712
      %v881 = vpack.c.bf16 %v757, %v742
      %v882 = vpack.c.bf16 %v787, %v772
      %v883 = vpack.c.bf16 %v817, %v802
      %v884 = vpack.c.bf16 %v847, %v832
      %v885 = vpack.c.bf16 %v877, %v862
      %v886 = vld [vmem:[%s5] sm:$0xf]
      %v887 = vld [vmem:[%s5 + $0x4] sm:$0xf]
      %v888 = vld [vmem:[%s5 + $0x8] sm:$0xf]
      %v889 = vld [vmem:[%s5 + $0xc] sm:$0xf]
      %v890 = vld [vmem:[%s5 + $0x10] sm:$0xf]
      %v891 = vld [vmem:[%s5 + $0x14] sm:$0xf]
      %v892 = vld [vmem:[%s5 + $0x18] sm:$0xf]
      %v893 = vld [vmem:[%s5 + $0x1c] sm:$0xf]
      %v894 = vld [vmem:[%s5 + $0x20] sm:$0xf]
      %v895 = vld [vmem:[%s5 + $0x24] sm:$0xf]
      %v896 = vld [vmem:[%s5 + $0x28] sm:$0xf]
      %v897 = vld [vmem:[%s5 + $0x2c] sm:$0xf]
      %v898 = vld [vmem:[%s5 + $0x30] sm:$0xf]
      %v899 = vld [vmem:[%s5 + $0x34] sm:$0xf]
      %v900 = vld [vmem:[%s5 + $0x38] sm:$0xf]
      %v901 = vld [vmem:[%s5 + $0x3c] sm:$0xf]
      %v902 = vld [vmem:[%s6] sm:$0x1]
      %v904 = vperm.slane %v902, 0
      %v922 = vunpack.c.l.b16 %v886
      %v923 = vunpack.c.l.b16 %v887
      %v924 = vunpack.c.l.b16 %v888
      %v925 = vunpack.c.l.b16 %v889
      %v926 = vunpack.c.l.b16 %v890
      %v927 = vunpack.c.l.b16 %v891
      %v928 = vunpack.c.l.b16 %v892
      %v929 = vunpack.c.l.b16 %v893
      %v930 = vunpack.c.l.b16 %v894
      %v931 = vunpack.c.l.b16 %v895
      %v932 = vunpack.c.l.b16 %v896
      %v933 = vunpack.c.l.b16 %v897
      %v934 = vunpack.c.l.b16 %v898
      %v935 = vunpack.c.l.b16 %v899
      %v936 = vunpack.c.l.b16 %v900
      %v937 = vunpack.c.l.b16 %v901
      %v938 = vpack.c.b16 %v923, %v922
      %v939 = vpack.c.b16 %v925, %v924
      %v940 = vpack.c.b16 %v927, %v926
      %v941 = vpack.c.b16 %v929, %v928
      %v942 = vpack.c.b16 %v931, %v930
      %v943 = vpack.c.b16 %v933, %v932
      %v944 = vpack.c.b16 %v935, %v934
      %v945 = vpack.c.b16 %v937, %v936
      %954 = vmatpush.bf16.msra.mxu0 %v945
      %955 = vmatpush.bf16.msra.mxu0 %v944
      %956 = vmatpush.bf16.msra.mxu0 %v943
      %957 = vmatpush.bf16.msra.mxu0 %v942
      %958 = vmatpush.bf16.msra.mxu0 %v941
      %959 = vmatpush.bf16.msra.mxu0 %v940
      %960 = vmatpush.bf16.msra.mxu0 %v939
      %961 = vmatpush.bf16.msra.mxu0 %v938
      %962 = vmatmul.bf16.gmra.mxu0 %v878
      %v963 = vpop.f32.mrf.mxu0
      %v964 = vadd.f32 %v904, %v963
      %v965 = vpop.f32.mrf.mxu0
      %v966 = vadd.f32 %v904, %v965
      %967 = vmatmul.bf16.gmra.mxu0 %v879
      %v968 = vpop.f32.mrf.mxu0
      %v969 = vadd.f32 %v904, %v968
      %v970 = vpop.f32.mrf.mxu0
      %v971 = vadd.f32 %v904, %v970
      %972 = vmatmul.bf16.gmra.mxu0 %v880
      %v973 = vpop.f32.mrf.mxu0
      %v974 = vadd.f32 %v904, %v973
      %v975 = vpop.f32.mrf.mxu0
      %v976 = vadd.f32 %v904, %v975
      %977 = vmatmul.bf16.gmra.mxu0 %v881
      %v978 = vpop.f32.mrf.mxu0
      %v979 = vadd.f32 %v904, %v978
      %v980 = vpop.f32.mrf.mxu0
      %v981 = vadd.f32 %v904, %v980
      %982 = vmatmul.bf16.gmra.mxu0 %v882
      %v983 = vpop.f32.mrf.mxu0
      %v984 = vadd.f32 %v904, %v983
      %v985 = vpop.f32.mrf.mxu0
      %v986 = vadd.f32 %v904, %v985
      %987 = vmatmul.bf16.gmra.mxu0 %v883
      %v988 = vpop.f32.mrf.mxu0
      %v989 = vadd.f32 %v904, %v988
      %v990 = vpop.f32.mrf.mxu0
      %v991 = vadd.f32 %v904, %v990
      %992 = vmatmul.bf16.gmra.mxu0 %v884
      %v993 = vpop.f32.mrf.mxu0
      %v994 = vadd.f32 %v904, %v993
      %v995 = vpop.f32.mrf.mxu0
      %v996 = vadd.f32 %v904, %v995
      %997 = vmatmul.bf16.gmra.mxu0 %v885
      %v998 = vpop.f32.mrf.mxu0
      %v999 = vadd.f32 %v904, %v998
      %v1000 = vpop.f32.mrf.mxu0
      %v1001 = vadd.f32 %v904, %v1000
      %1002 = vdwg.mxu0
      %1003 = vst [vmem:[%s280] sm:$0xff] %v964
      %1004 = vst [vmem:[%s280 + $0x8] sm:$0xff] %v966
      %1005 = vst [vmem:[%s280 + $0x10] sm:$0xff] %v969
      %1006 = vst [vmem:[%s280 + $0x18] sm:$0xff] %v971
      %1007 = vst [vmem:[%s280 + $0x20] sm:$0xff] %v974
      %1008 = vst [vmem:[%s280 + $0x28] sm:$0xff] %v976
      %1009 = vst [vmem:[%s280 + $0x30] sm:$0xff] %v979
      %1010 = vst [vmem:[%s280 + $0x38] sm:$0xff] %v981
      %1011 = vst [vmem:[%s280 + $0x40] sm:$0xff] %v984
      %1012 = vst [vmem:[%s280 + $0x48] sm:$0xff] %v986
      %1013 = vst [vmem:[%s280 + $0x50] sm:$0xff] %v989
      %1014 = vst [vmem:[%s280 + $0x58] sm:$0xff] %v991
      %1015 = vst [vmem:[%s280 + $0x60] sm:$0xff] %v994
      %1016 = vst [vmem:[%s280 + $0x68] sm:$0xff] %v996
      %1017 = vst [vmem:[%s280 + $0x70] sm:$0xff] %v999
      %1018 = vst [vmem:[%s280 + $0x78] sm:$0xff] %v1001
      %s1019 = smul.u32 16, %s18
      %p1020 = scmp.lt.s32.totalorder %s1019, 31
      %s1021 = scalar_select %p1020, %s1019, 31
      %s1022 = smul.addr %s1021, 8
      %s1023 = scalar_lea.vmem %s7, %s1022
      // Predicated region
      $region49: #{net_forward.1} parent=47 // pred_check
        %p1024 = pneg %p188
      $region50: #{net_forward.1} parent=47 // pred_check_branch
        %1026 = sbr.rel (%p1024) target = $region52
      $region51: #{net_forward.1} parent=47 // pred_region
        %s1027 = smul.u32 16, %s18
      $region52: #{net_forward.1} parent=47 // pred_fallthru
        _
    $region48: #{net_forward.1} parent=5 // pred_fallthru
      _
    %p1028 = scmp.le.s32.totalorder 2, %s13
    // Predicated region
    $region53: #{net_forward.1} parent=5 // pred_check
      %p1029 = pneg %p1028
    $region54: #{net_forward.1} parent=5 // pred_check_branch
      %1031 = sbr.rel (%p1029) target = $region56
    $region55: #{net_forward.1} parent=5 // pred_region
      %s1032 = ssub.s32 %s13, 2
      // Predicated region
      $region57: #{net_forward.1} parent=55 // pred_check
        %p1033 = pneg %p194
      $region58: #{net_forward.1} parent=55 // pred_check_branch
        %1035 = sbr.rel (%p1033) target = $region60
      $region59: #{net_forward.1} parent=55 // pred_region
        %s1036 = smul.u32 16, %s19
        %p1037 = scmp.lt.s32.totalorder %s1036, 31
        %s1038 = scalar_select %p1037, %s1036, 31
        %s1039 = smul.addr %s1038, 8
        %s1040 = scalar_lea.vmem %s7, %s1039
      $region60: #{net_forward.1} parent=55 // pred_fallthru
        _
    $region56: #{net_forward.1} parent=5 // pred_fallthru
      _
  $region6: #{net_forward.1} parent=0 // loop_footer
    %s17 = sadd.s32 1, %s13
  $region7: #{net_forward.1} parent=0 // loop_footer_branch
    %12 = sbr.rel target = $region3
  $region8: #{net_forward.1} parent=0 // loop_exit
    _

</llo_original>
